<compile_context>
chip_gen: v5e
topology: v5e:2x2
jax: 0.10.0
libtpu: 0.0.40
codegen_flags: <defaults>
</compile_context>

<pallas_src>
import math

import jax
import jax.numpy as jnp
from jax.experimental import pallas as pl
from jax.experimental.pallas import tpu as pltpu


def _round_up(x: int, mult: int) -> int:
    return ((x + mult - 1) // mult) * mult


# ------------------------------------------------------------------ kernels

def _single_block_matmul_kernel(a_ref, b_ref, o_ref):
    # Whole problem lives in one VMEM block: one MXU matmul, no grid loop.
    o_ref[...] = jnp.dot(
        a_ref[...], b_ref[...], preferred_element_type=jnp.float32
    ).astype(o_ref.dtype)


def _tiled_matmul_kernel(a_ref, b_ref, o_ref, acc_ref):
    # grid = (m_blocks, n_blocks, k_blocks); reduction axis (k) is last and
    # marked "arbitrary"; the output block stays resident across it.
    @pl.when(pl.program_id(2) == 0)
    def _():
        acc_ref[...] = jnp.zeros_like(acc_ref)

    acc_ref[...] += jnp.dot(
        a_ref[...], b_ref[...], preferred_element_type=jnp.float32
    )

    @pl.when(pl.program_id(2) == pl.num_programs(2) - 1)
    def _():
        o_ref[...] = acc_ref[...].astype(o_ref.dtype)


# ------------------------------------------------------------------ wrapper

_SMALL_LIMIT = 512 * 512  # per-operand element count for the single-block path


def matrix_decomposer_forward(mat_a, mat_b, *, tm=512, tn=512, tk=512,
                              use_bf16_inputs=False, out_dtype=None):
    """Pallas equivalent of MatrixDecomposer.forward(): mat_a @ mat_b."""
    m, k = mat_a.shape
    k2, n = mat_b.shape
    assert k == k2, "inner dimensions must match"
    out_dtype = jnp.dtype(out_dtype or mat_a.dtype)

    flops = 2 * m * n * k

    # ---- Small-problem fast path: one block, no k grid, no accumulator. ----
    if max(m * k, k * n, m * n) <= _SMALL_LIMIT:
        bytes_accessed = (mat_a.size * mat_a.dtype.itemsize
                          + mat_b.size * mat_b.dtype.itemsize
                          + m * n * out_dtype.itemsize)
        return pl.pallas_call(
            _single_block_matmul_kernel,
            out_shape=jax.ShapeDtypeStruct((m, n), out_dtype),
            cost_estimate=pl.CostEstimate(
                flops=flops, transcendentals=0, bytes_accessed=bytes_accessed),
        )(mat_a, mat_b)

    # ---- Tiled path: big tiles, deep K, explicit VMEM budget. --------------
    a, b = mat_a, mat_b
    if use_bf16_inputs:
        # Optional precision/bandwidth trade: bf16 inputs, f32 accumulation.
        # TODO(synk): results differ slightly from the f32 PyTorch reference.
        a = a.astype(jnp.bfloat16)
        b = b.astype(jnp.bfloat16)

    # Clamp tiles to the problem, keeping (sublane=8, lane=128) alignment.
    tm = min(tm, _round_up(m, 8))
    tk = min(tk, _round_up(k, 128))
    tn = min(tn, _round_up(n, 128))

    # Keep >= 2 blocks along a parallel axis so both v7x TensorCores get work
    # (harmless extra grid step on the single-TC v5e/v6e).
    if _round_up(m, tm) == tm and _round_up(n, tn) == tn:
        if tn % 256 == 0:
            tn //= 2                           # clean lane-aligned halves of N
        elif tm > 8:
            tm = _round_up((tm + 1) // 2, 8)   # split M at sublane granularity
        elif tn > 128:
            tn = _round_up((tn + 1) // 2, 128)

    m_pad = _round_up(m, tm)
    k_pad = _round_up(k, tk)
    n_pad = _round_up(n, tn)
    if (m_pad, k_pad) != (m, k):
        a = jnp.pad(a, ((0, m_pad - m), (0, k_pad - k)))
    if (k_pad, n_pad) != (k, n):
        b = jnp.pad(b, ((0, k_pad - k), (0, n_pad - n)))

    grid = (m_pad // tm, n_pad // tn, k_pad // tk)

    a_item = a.dtype.itemsize
    b_item = b.dtype.itemsize
    o_item = out_dtype.itemsize
    # Double-buffered A/B/out tiles + resident f32 accumulator, with headroom;
    # stay below v7x's 64 MiB physical VMEM.
    vmem_est = (2 * tm * tk * a_item + 2 * tk * tn * b_item
                + 2 * tm * tn * o_item + tm * tn * 4)
    vmem_limit = int(min(max(32 << 20, 2 * vmem_est), 60 << 20))

    bytes_accessed = (grid[1] * m_pad * k_pad * a_item    # A re-read per n block
                      + grid[0] * k_pad * n_pad * b_item  # B re-read per m block
                      + m_pad * n_pad * o_item)

    out = pl.pallas_call(
        _tiled_matmul_kernel,
        out_shape=jax.ShapeDtypeStruct((m_pad, n_pad), out_dtype),
        grid_spec=pltpu.PrefetchScalarGridSpec(
            num_scalar_prefetch=0,
            grid=grid,
            in_specs=[
                pl.BlockSpec((tm, tk), lambda i, j, kk: (i, kk)),
                pl.BlockSpec((tk, tn), lambda i, j, kk: (kk, j)),
            ],
            out_specs=pl.BlockSpec((tm, tn), lambda i, j, kk: (i, j)),
            scratch_shapes=[pltpu.VMEM((tm, tn), jnp.float32)],
        ),
        compiler_params=pltpu.CompilerParams(
            dimension_semantics=("parallel", "parallel", "arbitrary"),
            vmem_limit_bytes=vmem_limit,
        ),
        cost_estimate=pl.CostEstimate(
            flops=flops, transcendentals=0, bytes_accessed=bytes_accessed),
    )(a, b)

    if (m_pad, n_pad) != (m, n):
        out = out[:m, :n]
    return out


def xavier_uniform(key, shape, dtype=jnp.float32):
    """Matches torch.nn.init.xavier_uniform_ (gain=1) for a 2-D weight."""
    fan_out, fan_in = shape
    bound = math.sqrt(6.0 / (fan_in + fan_out))
    return jax.random.uniform(key, shape, dtype=dtype, minval=-bound, maxval=bound)


if __name__ == "__main__":
    key = jax.random.PRNGKey(0)
    k_a, k_b, k_c, k_d = jax.random.split(key, 4)

    # MatrixDecomposer(mat, k): mat is (m, n); factors are (m, k) and (k, n).
    # 1) Small demo shape: exercises the single-block fast path.
    m, n, rank = 128, 256, 64
    mat_a = xavier_uniform(k_a, (m, rank))
    mat_b = xavier_uniform(k_b, (rank, n))
    out_small = jax.block_until_ready(matrix_decomposer_forward(mat_a, mat_b))
    ref_small = mat_a @ mat_b
    assert out_small.shape == (m, n)
    assert jnp.allclose(out_small, ref_small, atol=1e-5, rtol=1e-5)

    # 2) Ragged medium shape: exercises the tiled path (zero-padding,
    #    k-axis accumulation, >=2 parallel blocks for the v7x dual core).
    m2, n2, rank2 = 200, 384, 1000
    mat_a2 = xavier_uniform(k_c, (m2, rank2))
    mat_b2 = xavier_uniform(k_d, (rank2, n2))
    out_big = jax.block_until_ready(matrix_decomposer_forward(mat_a2, mat_b2))
    ref_big = mat_a2 @ mat_b2
    assert out_big.shape == (m2, n2)
    assert jnp.allclose(out_big, ref_big, atol=1e-4, rtol=1e-4)

    print("KERNEL_OK")
</pallas_src>

<mosaic_0001>
module attributes {stable_mosaic.version = 11 : i64} {
  func.func @_single_block_matmul_kernel(%arg0: memref<128x64xf32, #tpu.memory_space<vmem>>, %arg1: memref<64x256xf32, #tpu.memory_space<vmem>>, %arg2: memref<128x256xf32, #tpu.memory_space<vmem>>) attributes {dimension_semantics = [], scalar_prefetch = 0 : i64, scratch_operands = 0 : i64, tpu.core_type = #tpu.core_type<tc>} {
    %c0 = arith.constant 0 : index
    %c0_0 = arith.constant 0 : index
    %0 = vector.load %arg0[%c0, %c0_0] : memref<128x64xf32, #tpu.memory_space<vmem>>, vector<128x64xf32>
    %c0_1 = arith.constant 0 : index
    %c0_2 = arith.constant 0 : index
    %1 = vector.load %arg1[%c0_1, %c0_2] : memref<64x256xf32, #tpu.memory_space<vmem>>, vector<64x256xf32>
    %cst = arith.constant dense<0.000000e+00> : vector<128x256xf32>
    %2 = tpu.matmul %0, %1, %cst {dimension_numbers = #tpu.dot_dimension_numbers<[1], [0], [0], [1], [0, 0, 1, 1], [], []>} : vector<128x64xf32>, vector<64x256xf32>, vector<128x256xf32> -> vector<128x256xf32>
    %c0_3 = arith.constant 0 : index
    %c0_4 = arith.constant 0 : index
    %3 = vector.load %arg2[%c0_3, %c0_4] : memref<128x256xf32, #tpu.memory_space<vmem>>, vector<128x256xf32>
    tpu.vector_store %arg2[%c0_3, %c0_4], %2 {strides = array<i32>} : memref<128x256xf32, #tpu.memory_space<vmem>>, vector<128x256xf32>,
    return
  }
}

</mosaic_0001>

<llo_original>
// kernel: tpu_custom_call.1
$region0: #{tpu_custom_call.1}
  #allocation0 [shape = 'u32[]', space=smem, size = 0x4, offset = 0x4, fixed_abs, tag = 'smem constant byte address 0x4 - core index']
  #allocation1 [shape = 'u32[72,128]{1,0:T(1,128)}', space=vmem, size = 0x9000, scoped, tag = 'internal scratch']
  %s0 = inlined_call_operand.vmem [shape: f32[128,64], index: 0, kind: input, shape index: {}]
  %s1 = inlined_call_operand.vmem [shape: f32[64,256], index: 1, kind: input, shape index: {}]
  %s2 = inlined_call_operand.hbm [shape: f32[128,256], index: 2, kind: output, shape index: {}]
  %s3 = sld [smem:[#allocation0]]
  $region18: #{tpu_custom_call.1} parent=0
    _
  %s5 = ssub.s32 1, %s3
  %s6 = scalar_select 0, %s5, %s3
  $region1: #{tpu_custom_call.1} parent=0
    #allocation2 [shape = 'u8[131072]{0}', space=vmem, size = 0x20000, scoped, tag = 'output window, operand 0, single buffered']
    #allocation3 [shape = 's32[1]{0}', space=sflag, size = 0x4, scoped, tag = 'scoped memory for tpu_custom_call.1']
    %7 = vsyncpa [#allocation3], 0
    // Predicated region
    $region2: #{tpu_custom_call.1} parent=1 // pred_check
      _
    $region3: #{tpu_custom_call.1} parent=1 // pred_check_branch
      %9 = sbr.rel (0) target = $region5
    $region4: #{tpu_custom_call.1} parent=1 // pred_region
      _
    $region5: #{tpu_custom_call.1} parent=1 // pred_fallthru
      _
    // Predicated region
    $region6: #{tpu_custom_call.1} parent=1 // pred_check
      _
    $region7: #{tpu_custom_call.1} parent=1 // pred_check_branch
      %11 = sbr.rel (0) target = $region9
    $region8: #{tpu_custom_call.1} parent=1 // pred_region
      _
    $region9: #{tpu_custom_call.1} parent=1 // pred_fallthru
      _
    %v12 = vld [vmem:[%s0] sm:$0xff]
    %v13 = vld [vmem:[%s0 + $0x8] sm:$0xff]
    %v14 = vld [vmem:[%s0 + $0x10] sm:$0xff]
    %v15 = vld [vmem:[%s0 + $0x18] sm:$0xff]
    %v16 = vld [vmem:[%s0 + $0x20] sm:$0xff]
    %v17 = vld [vmem:[%s0 + $0x28] sm:$0xff]
    %v18 = vld [vmem:[%s0 + $0x30] sm:$0xff]
    %v19 = vld [vmem:[%s0 + $0x38] sm:$0xff]
    %v20 = vld [vmem:[%s0 + $0x40] sm:$0xff]
    %v21 = vld [vmem:[%s0 + $0x48] sm:$0xff]
    %v22 = vld [vmem:[%s0 + $0x50] sm:$0xff]
    %v23 = vld [vmem:[%s0 + $0x58] sm:$0xff]
    %v24 = vld [vmem:[%s0 + $0x60] sm:$0xff]
    %v25 = vld [vmem:[%s0 + $0x68] sm:$0xff]
    %v26 = vld [vmem:[%s0 + $0x70] sm:$0xff]
    %v27 = vld [vmem:[%s0 + $0x78] sm:$0xff]
    %v28 = vld [vmem:[%s1] sm:$0xff]
    %v29 = vld [vmem:[%s1 + $0x8] sm:$0xff]
    %v30 = vld [vmem:[%s1 + $0x10] sm:$0xff]
    %v31 = vld [vmem:[%s1 + $0x18] sm:$0xff]
    %v32 = vld [vmem:[%s1 + $0x20] sm:$0xff]
    %v33 = vld [vmem:[%s1 + $0x28] sm:$0xff]
    %v34 = vld [vmem:[%s1 + $0x30] sm:$0xff]
    %v35 = vld [vmem:[%s1 + $0x38] sm:$0xff]
    %v36 = vld [vmem:[%s1 + $0x40] sm:$0xff]
    %v37 = vld [vmem:[%s1 + $0x48] sm:$0xff]
    %v38 = vld [vmem:[%s1 + $0x50] sm:$0xff]
    %v39 = vld [vmem:[%s1 + $0x58] sm:$0xff]
    %v40 = vld [vmem:[%s1 + $0x60] sm:$0xff]
    %v41 = vld [vmem:[%s1 + $0x68] sm:$0xff]
    %v42 = vld [vmem:[%s1 + $0x70] sm:$0xff]
    %v43 = vld [vmem:[%s1 + $0x78] sm:$0xff]
    %vm44 = vcmask 523264
    %v46 = vsel %vm44, %v12, 0
    %v49 = vsel %vm44, %v13, 0
    %v52 = vsel %vm44, %v14, 0
    %v55 = vsel %vm44, %v15, 0
    %v58 = vsel %vm44, %v16, 0
    %v61 = vsel %vm44, %v17, 0
    %v64 = vsel %vm44, %v18, 0
    %v67 = vsel %vm44, %v19, 0
    %v70 = vsel %vm44, %v20, 0
    %v73 = vsel %vm44, %v21, 0
    %v76 = vsel %vm44, %v22, 0
    %v79 = vsel %vm44, %v23, 0
    %v82 = vsel %vm44, %v24, 0
    %v85 = vsel %vm44, %v25, 0
    %v88 = vsel %vm44, %v26, 0
    %v91 = vsel %vm44, %v27, 0
    %93 = vmatpush.msra.mxu0 0.0
    %94 = vmatpush.msra.mxu0 0.0
    %95 = vmatpush.msra.mxu0 0.0
    %96 = vmatpush.msra.mxu0 0.0
    %97 = vmatpush.msra.mxu0 0.0
    %98 = vmatpush.msra.mxu0 0.0
    %99 = vmatpush.msra.mxu0 0.0
    %100 = vmatpush.msra.mxu0 0.0
    %101 = vmatpush.msra.mxu0 %v42
    %102 = vmatpush.msra.mxu0 %v40
    %103 = vmatpush.msra.mxu0 %v38
    %104 = vmatpush.msra.mxu0 %v36
    %105 = vmatpush.msra.mxu0 %v34
    %106 = vmatpush.msra.mxu0 %v32
    %107 = vmatpush.msra.mxu0 %v30
    %108 = vmatpush.msra.mxu0 %v28
    %109 = vmatmul.f32.gmra.mxu0 %v46
    %v110 = vpop.f32.mrf.mxu0
    %v111 = vadd.f32 0.0, %v110
    %112 = vmatmul.f32.gmra.mxu0 %v49
    %v113 = vpop.f32.mrf.mxu0
    %v114 = vadd.f32 0.0, %v113
    %115 = vmatmul.f32.gmra.mxu0 %v52
    %v116 = vpop.f32.mrf.mxu0
    %v117 = vadd.f32 0.0, %v116
    %118 = vmatmul.f32.gmra.mxu0 %v55
    %v119 = vpop.f32.mrf.mxu0
    %v120 = vadd.f32 0.0, %v119
    %121 = vmatmul.f32.gmra.mxu0 %v58
    %v122 = vpop.f32.mrf.mxu0
    %v123 = vadd.f32 0.0, %v122
    %124 = vmatmul.f32.gmra.mxu0 %v61
    %v125 = vpop.f32.mrf.mxu0
    %v126 = vadd.f32 0.0, %v125
    %127 = vmatmul.f32.gmra.mxu0 %v64
    %v128 = vpop.f32.mrf.mxu0
    %v129 = vadd.f32 0.0, %v128
    %130 = vmatmul.f32.gmra.mxu0 %v67
    %v131 = vpop.f32.mrf.mxu0
    %v132 = vadd.f32 0.0, %v131
    %133 = vmatmul.f32.gmra.mxu0 %v70
    %v134 = vpop.f32.mrf.mxu0
    %v135 = vadd.f32 0.0, %v134
    %136 = vmatmul.f32.gmra.mxu0 %v73
    %v137 = vpop.f32.mrf.mxu0
    %v138 = vadd.f32 0.0, %v137
    %139 = vmatmul.f32.gmra.mxu0 %v76
    %v140 = vpop.f32.mrf.mxu0
    %v141 = vadd.f32 0.0, %v140
    %142 = vmatmul.f32.gmra.mxu0 %v79
    %v143 = vpop.f32.mrf.mxu0
    %v144 = vadd.f32 0.0, %v143
    %145 = vmatmul.f32.gmra.mxu0 %v82
    %v146 = vpop.f32.mrf.mxu0
    %v147 = vadd.f32 0.0, %v146
    %148 = vmatmul.f32.gmra.mxu0 %v85
    %v149 = vpop.f32.mrf.mxu0
    %v150 = vadd.f32 0.0, %v149
    %151 = vmatmul.f32.gmra.mxu0 %v88
    %v152 = vpop.f32.mrf.mxu0
    %v153 = vadd.f32 0.0, %v152
    %154 = vmatmul.f32.gmra.mxu0 %v91
    %v155 = vpop.f32.mrf.mxu0
    %v156 = vadd.f32 0.0, %v155
    %157 = vdwg.mxu0
    %158 = vmatpush.msra.mxu0 0.0
    %159 = vmatpush.msra.mxu0 0.0
    %160 = vmatpush.msra.mxu0 0.0
    %161 = vmatpush.msra.mxu0 0.0
    %162 = vmatpush.msra.mxu0 0.0
    %163 = vmatpush.msra.mxu0 0.0
    %164 = vmatpush.msra.mxu0 0.0
    %165 = vmatpush.msra.mxu0 0.0
    %166 = vmatpush.msra.mxu0 %v43
    %167 = vmatpush.msra.mxu0 %v41
    %168 = vmatpush.msra.mxu0 %v39
    %169 = vmatpush.msra.mxu0 %v37
    %170 = vmatpush.msra.mxu0 %v35
    %171 = vmatpush.msra.mxu0 %v33
    %172 = vmatpush.msra.mxu0 %v31
    %173 = vmatpush.msra.mxu0 %v29
    %174 = vmatmul.f32.gmra.mxu0 %v46
    %v175 = vpop.f32.mrf.mxu0
    %v176 = vadd.f32 0.0, %v175
    %177 = vmatmul.f32.gmra.mxu0 %v49
    %v178 = vpop.f32.mrf.mxu0
    %v179 = vadd.f32 0.0, %v178
    %180 = vmatmul.f32.gmra.mxu0 %v52
    %v181 = vpop.f32.mrf.mxu0
    %v182 = vadd.f32 0.0, %v181
    %183 = vmatmul.f32.gmra.mxu0 %v55
    %v184 = vpop.f32.mrf.mxu0
    %v185 = vadd.f32 0.0, %v184
    %186 = vmatmul.f32.gmra.mxu0 %v58
    %v187 = vpop.f32.mrf.mxu0
    %v188 = vadd.f32 0.0, %v187
    %189 = vmatmul.f32.gmra.mxu0 %v61
    %v190 = vpop.f32.mrf.mxu0
    %v191 = vadd.f32 0.0, %v190
    %192 = vmatmul.f32.gmra.mxu0 %v64
    %v193 = vpop.f32.mrf.mxu0
    %v194 = vadd.f32 0.0, %v193
    %195 = vmatmul.f32.gmra.mxu0 %v67
    %v196 = vpop.f32.mrf.mxu0
    %v197 = vadd.f32 0.0, %v196
    %198 = vmatmul.f32.gmra.mxu0 %v70
    %v199 = vpop.f32.mrf.mxu0
    %v200 = vadd.f32 0.0, %v199
    %201 = vmatmul.f32.gmra.mxu0 %v73
    %v202 = vpop.f32.mrf.mxu0
    %v203 = vadd.f32 0.0, %v202
    %204 = vmatmul.f32.gmra.mxu0 %v76
    %v205 = vpop.f32.mrf.mxu0
    %v206 = vadd.f32 0.0, %v205
    %207 = vmatmul.f32.gmra.mxu0 %v79
    %v208 = vpop.f32.mrf.mxu0
    %v209 = vadd.f32 0.0, %v208
    %210 = vmatmul.f32.gmra.mxu0 %v82
    %v211 = vpop.f32.mrf.mxu0
    %v212 = vadd.f32 0.0, %v211
    %213 = vmatmul.f32.gmra.mxu0 %v85
    %v214 = vpop.f32.mrf.mxu0
    %v215 = vadd.f32 0.0, %v214
    %216 = vmatmul.f32.gmra.mxu0 %v88
    %v217 = vpop.f32.mrf.mxu0
    %v218 = vadd.f32 0.0, %v217
    %219 = vmatmul.f32.gmra.mxu0 %v91
    %v220 = vpop.f32.mrf.mxu0
    %v221 = vadd.f32 0.0, %v220
    %222 = vdwg.mxu0
    %223 = vst [vmem:[#allocation2] sm:$0xff] %v111
    %224 = vst [vmem:[#allocation2 + $0x8] sm:$0xff] %v176
    %225 = vst [vmem:[#allocation2 + $0x10] sm:$0xff] %v114
    %226 = vst [vmem:[#allocation2 + $0x18] sm:$0xff] %v179
    %227 = vst [vmem:[#allocation2 + $0x20] sm:$0xff] %v117
    %228 = vst [vmem:[#allocation2 + $0x28] sm:$0xff] %v182
    %229 = vst [vmem:[#allocation2 + $0x30] sm:$0xff] %v120
    %230 = vst [vmem:[#allocation2 + $0x38] sm:$0xff] %v185
    %231 = vst [vmem:[#allocation2 + $0x40] sm:$0xff] %v123
    %232 = vst [vmem:[#allocation2 + $0x48] sm:$0xff] %v188
    %233 = vst [vmem:[#allocation2 + $0x50] sm:$0xff] %v126
    %234 = vst [vmem:[#allocation2 + $0x58] sm:$0xff] %v191
    %235 = vst [vmem:[#allocation2 + $0x60] sm:$0xff] %v129
    %236 = vst [vmem:[#allocation2 + $0x68] sm:$0xff] %v194
    %237 = vst [vmem:[#allocation2 + $0x70] sm:$0xff] %v132
    %238 = vst [vmem:[#allocation2 + $0x78] sm:$0xff] %v197
    %239 = vst [vmem:[#allocation2 + $0x80] sm:$0xff] %v135
    %240 = vst [vmem:[#allocation2 + $0x88] sm:$0xff] %v200
    %241 = vst [vmem:[#allocation2 + $0x90] sm:$0xff] %v138
    %242 = vst [vmem:[#allocation2 + $0x98] sm:$0xff] %v203
    %243 = vst [vmem:[#allocation2 + $0xa0] sm:$0xff] %v141
    %244 = vst [vmem:[#allocation2 + $0xa8] sm:$0xff] %v206
    %245 = vst [vmem:[#allocation2 + $0xb0] sm:$0xff] %v144
    %246 = vst [vmem:[#allocation2 + $0xb8] sm:$0xff] %v209
    %247 = vst [vmem:[#allocation2 + $0xc0] sm:$0xff] %v147
    %248 = vst [vmem:[#allocation2 + $0xc8] sm:$0xff] %v212
    %249 = vst [vmem:[#allocation2 + $0xd0] sm:$0xff] %v150
    %250 = vst [vmem:[#allocation2 + $0xd8] sm:$0xff] %v215
    %251 = vst [vmem:[#allocation2 + $0xe0] sm:$0xff] %v153
    %252 = vst [vmem:[#allocation2 + $0xe8] sm:$0xff] %v218
    %253 = vst [vmem:[#allocation2 + $0xf0] sm:$0xff] %v156
    %254 = vst [vmem:[#allocation2 + $0xf8] sm:$0xff] %v221
    // Predicated region
    $region10: #{tpu_custom_call.1} parent=1 // pred_check
      _
    $region11: #{tpu_custom_call.1} parent=1 // pred_check_branch
      %256 = sbr.rel (0) target = $region13
    $region12: #{tpu_custom_call.1} parent=1 // pred_region
      %258 = vsyncadd [#allocation3], 0
      %s259 = sshll.u32 [#allocation2], 4
      %s260 = int_to_ptr.vmem [resolvable:$true] %s259
      %s261 = sshll.u32 %s2, 4
      %s262 = int_to_ptr.hbm [resolvable:$true] %s261
      %267 = dma.vmem_to_hbm [thread:$0]  %s260, 4096, %s262, [#allocation3], 256, 256, 16
    $region13: #{tpu_custom_call.1} parent=1 // pred_fallthru
      _
    // Predicated region
    $region14: #{tpu_custom_call.1} parent=1 // pred_check
      _
    $region15: #{tpu_custom_call.1} parent=1 // pred_check_branch
      %269 = sbr.rel (0) target = $region17
    $region16: #{tpu_custom_call.1} parent=1 // pred_region
      %271 = dma.done [#allocation3], 4096
    $region17: #{tpu_custom_call.1} parent=1 // pred_fallthru
      _
    %272 = vsyncpa [#allocation3], 1

</llo_original>
